<compile_context>
chip_gen: v6e
topology: v6e:2x2x1
jax: 0.10.0
libtpu: 0.0.40
codegen_flags: <defaults>
</compile_context>

<pallas_src>
import jax
import jax.numpy as jnp
from jax.experimental import pallas as pl
from jax.experimental.pallas import tpu as pltpu

NEG_INF = -1e30   # python floats: jnp scalars here would be captured kernel constants
EPS = 1e-20


def _full_spec(shape):
    nd = len(shape)
    return pl.BlockSpec(shape, lambda i, _nd=nd: (0,) * _nd)


# ---------------------------------------------------------------------------
# Kernel 1: GATConv (heads=1) + bias + ReLU, fused with the layer-2 projection
#           and the per-node path-attention scalars.
# ---------------------------------------------------------------------------
def _gat_proj_kernel(x_ref, w1_ref, asrc_ref, adst_ref, adj_ref, b1_ref,
                     w2_ref, a1_ref, a2_ref, a3_ref,
                     h2_ref, s1_ref, s2_ref, s3_ref):
    h = jnp.dot(x_ref[...], w1_ref[...], preferred_element_type=jnp.float32)      # [N, H]
    # e[i, j] = a_dst.h_i + a_src.h_j : column term via VPU mul + lane reduce,
    # row term via a contraction-over-last-dims matmul (no explicit full h.T).
    e_dst = jnp.sum(h * adst_ref[...], axis=-1, keepdims=True)                    # [N, 1]
    e_src = jax.lax.dot_general(asrc_ref[...], h, (((1,), (1,)), ((), ())),
                                preferred_element_type=jnp.float32)               # [1, N]
    z = e_dst + e_src
    z = jnp.where(z > 0, z, 0.2 * z)                                              # LeakyReLU(0.2)
    adj = adj_ref[...]
    zm = jnp.where(adj > 0, z, NEG_INF)
    m = jnp.max(zm, axis=-1, keepdims=True)
    p = jnp.where(adj > 0, jnp.exp(zm - m), 0.0)
    denom = jnp.sum(p, axis=-1, keepdims=True)
    alpha = p * pl.reciprocal(jnp.maximum(denom, EPS), approx=True)               # masked row softmax
    x1 = jnp.dot(alpha, h, preferred_element_type=jnp.float32) + b1_ref[...]
    x1 = jnp.maximum(x1, 0.0)                                                     # ReLU (+ eval dropout = id)

    h2 = jnp.dot(x1, w2_ref[...], preferred_element_type=jnp.float32)             # [N, R]
    h2_ref[...] = h2
    s1_ref[...] = jnp.sum(h2 * a1_ref[...], axis=-1, keepdims=True)               # path start-node term
    s2_ref[...] = jnp.sum(h2 * a2_ref[...], axis=-1, keepdims=True)               # path middle-node term
    s3_ref[...] = jnp.sum(h2 * a3_ref[...], axis=-1, keepdims=True)               # path target-node term


def gat_project(xp, adj, w1, a_src, a_dst, b1, w2, a1, a2, a3):
    n_pad = xp.shape[0]
    r_pad = w2.shape[1]
    ins = (xp, w1, a_src, a_dst, adj, b1, w2, a1, a2, a3)
    out_shapes = (
        jax.ShapeDtypeStruct((n_pad, r_pad), jnp.float32),   # h2
        jax.ShapeDtypeStruct((n_pad, 1), jnp.float32),       # s1
        jax.ShapeDtypeStruct((n_pad, 1), jnp.float32),       # s2
        jax.ShapeDtypeStruct((n_pad, 1), jnp.float32),       # s3
    )
    return pl.pallas_call(
        _gat_proj_kernel,
        out_shape=out_shapes,
        grid=(1,),
        in_specs=[_full_spec(a.shape) for a in ins],
        out_specs=tuple(_full_spec(s.shape) for s in out_shapes),
        compiler_params=pltpu.CompilerParams(dimension_semantics=("arbitrary",)),
    )(*ins)


# ---------------------------------------------------------------------------
# Kernel 2: PAGATConv over second-order paths i -> j -> k, tiled (k, i) grid
#           with online softmax over the path axis.
# ---------------------------------------------------------------------------
def _pagat_kernel(s3_ref, s1_ref, s2_ref, mask_ref, h2i_ref, b2_ref, out_ref,
                  m2_sc, m3_sc, l_sc, acc_sc):
    i_idx = pl.program_id(1)

    @pl.when(i_idx == 0)
    def _init():
        m2_sc[...] = jnp.full(m2_sc.shape, NEG_INF, jnp.float32)
        m3_sc[...] = jnp.full(m3_sc.shape, NEG_INF, jnp.float32)
        l_sc[...] = jnp.zeros(l_sc.shape, jnp.float32)
        acc_sc[...] = jnp.zeros(acc_sc.shape, jnp.float32)

    # logits z[k, i, j] = LeakyReLU(s1_i + s2_j + s3_k), built purely by broadcasting
    # (no one-hot selection matrices, no in-kernel transposes/reshapes).
    z = s3_ref[...] + s1_ref[...] + s2_ref[...]          # [BK,1,1]+[1,BI,1]+[1,1,NJ] -> [BK,BI,NJ]
    z = jnp.where(z > 0, z, 0.2 * z)                     # LeakyReLU(0.2)
    valid = mask_ref[...] > 0.0
    zm = jnp.where(valid, z, NEG_INF)

    # running max kept in both 3D (for broadcasting vs zm) and 2D (for l/acc) shapes.
    mb3 = jnp.max(jnp.max(zm, axis=2, keepdims=True), axis=1, keepdims=True)   # [BK,1,1]
    mb2 = jnp.max(jnp.max(zm, axis=2), axis=1, keepdims=True)                  # [BK,1]
    m3_new = jnp.maximum(m3_sc[...], mb3)
    m2_new = jnp.maximum(m2_sc[...], mb2)
    corr = jnp.exp(m2_sc[...] - m2_new)                                        # [BK,1]

    p = jnp.where(valid, jnp.exp(zm - m3_new), 0.0)                            # [BK,BI,NJ]
    w = jnp.sum(p, axis=2)                                                     # [BK,BI]  (sum over j)
    l_sc[...] = corr * l_sc[...] + jnp.sum(w, axis=1, keepdims=True)
    acc_sc[...] = corr * acc_sc[...] + jnp.dot(w, h2i_ref[...],
                                               preferred_element_type=jnp.float32)
    m3_sc[...] = m3_new
    m2_sc[...] = m2_new

    @pl.when(i_idx == pl.num_programs(1) - 1)
    def _finalize():
        inv = pl.reciprocal(jnp.maximum(l_sc[...], EPS), approx=True)
        out_ref[...] = acc_sc[...] * inv + b2_ref[...]


def pagat(s3_3d, s1_3d, s2_3d, mask3, h2, b2, *, bk=8, bi=8):
    n_pad, r_pad = h2.shape
    assert n_pad % bk == 0 and n_pad % bi == 0
    grid = (n_pad // bk, n_pad // bi)
    return pl.pallas_call(
        _pagat_kernel,
        out_shape=jax.ShapeDtypeStruct((n_pad, r_pad), jnp.float32),
        grid=grid,
        in_specs=[
            pl.BlockSpec((bk, 1, 1), lambda k, i: (k, 0, 0)),      # s3 (target-node term)
            pl.BlockSpec((1, bi, 1), lambda k, i: (0, i, 0)),      # s1 (start-node term)
            pl.BlockSpec((1, 1, n_pad), lambda k, i: (0, 0, 0)),   # s2 (middle-node term)
            pl.BlockSpec((bk, bi, n_pad), lambda k, i: (k, i, 0)),  # path mask[k, i, j]
            pl.BlockSpec((bi, r_pad), lambda k, i: (i, 0)),        # h2 i-tile (aggregated features)
            pl.BlockSpec((1, r_pad), lambda k, i: (0, 0)),         # bias
        ],
        out_specs=pl.BlockSpec((bk, r_pad), lambda k, i: (k, 0)),
        scratch_shapes=[
            pltpu.VMEM((bk, 1), jnp.float32),       # m (2D)
            pltpu.VMEM((bk, 1, 1), jnp.float32),    # m (3D)
            pltpu.VMEM((bk, 1), jnp.float32),       # l
            pltpu.VMEM((bk, r_pad), jnp.float32),   # acc
        ],
        compiler_params=pltpu.CompilerParams(
            dimension_semantics=("parallel", "arbitrary")),
    )(s3_3d, s1_3d, s2_3d, mask3, h2, b2)


# ---------------------------------------------------------------------------
# Forward wrapper (padding + graph densification glue in plain JAX).
# ---------------------------------------------------------------------------
def _round_up(v, m):
    return ((v + m - 1) // m) * m


def pgat_forward(x, edge_index, sec_order_edge_index, params, *, bk=8, bi=8):
    """PGAT.forward in eval mode (dropouts are identity)."""
    n, emb = x.shape
    hid = params["w1"].shape[1]
    rep = params["w2"].shape[1]
    n_pad = max(_round_up(n, 8), 8)
    e_pad = _round_up(emb, 128)
    h_pad = _round_up(hid, 128)
    r_pad = _round_up(rep, 128)

    def pad2(a, rows, cols):
        return jnp.pad(a.astype(jnp.float32),
                       ((0, rows - a.shape[0]), (0, cols - a.shape[1])))

    xp = pad2(x, n_pad, e_pad)
    w1 = pad2(params["w1"], e_pad, h_pad)
    w2 = pad2(params["w2"], h_pad, r_pad)
    a_src = pad2(params["a_src"], 1, h_pad)
    a_dst = pad2(params["a_dst"], 1, h_pad)
    b1 = pad2(params["b1"], 1, h_pad)
    a1 = pad2(params["a1"], 1, r_pad)
    a2 = pad2(params["a2"], 1, r_pad)
    a3 = pad2(params["a3"], 1, r_pad)
    b2 = pad2(params["b2"], 1, r_pad)

    # dense adjacency (dst, src) with self loops (PyG GATConv add_self_loops=True)
    adj = jnp.zeros((n_pad, n_pad), jnp.float32)
    adj = adj.at[edge_index[1], edge_index[0]].set(1.0)
    adj = adj.at[jnp.arange(n), jnp.arange(n)].set(1.0)

    # second-order path mask mask[k, i, j] (paths i -> j -> k)
    pi, pj, pk = sec_order_edge_index
    mask3 = jnp.zeros((n_pad, n_pad, n_pad), jnp.float32).at[pk, pi, pj].set(1.0)

    # Kernel 1: GATConv + ReLU fused with layer-2 projection + path-attention scalars.
    h2, s1, s2, s3 = gat_project(xp, adj, w1, a_src, a_dst, b1, w2, a1, a2, a3)

    # Kernel 2: tiled PAGATConv with online softmax over paths.
    out = pagat(s3.reshape(n_pad, 1, 1),
                s1.reshape(1, n_pad, 1),
                s2.reshape(1, 1, n_pad),
                mask3, h2, b2, bk=bk, bi=bi)
    return out[:n, :rep]


# ---------------------------------------------------------------------------
# Pure-JAX reference of the same dense formulation (for validation).
# ---------------------------------------------------------------------------
def _ref_forward(x, edge_index, sec_order_edge_index, params):
    n = x.shape[0]
    adj = jnp.zeros((n, n), jnp.float32).at[edge_index[1], edge_index[0]].set(1.0)
    adj = jnp.maximum(adj, jnp.eye(n, dtype=jnp.float32))

    h = x @ params["w1"]
    z = (h * params["a_dst"]).sum(-1, keepdims=True) + (h * params["a_src"]).sum(-1)[None, :]
    z = jnp.where(z > 0, z, 0.2 * z)
    zm = jnp.where(adj > 0, z, -1e30)
    p = jnp.where(adj > 0, jnp.exp(zm - zm.max(-1, keepdims=True)), 0.0)
    alpha = p / jnp.maximum(p.sum(-1, keepdims=True), 1e-20)
    x1 = jnp.maximum(alpha @ h + params["b1"], 0.0)

    h2 = x1 @ params["w2"]
    s1 = (h2 * params["a1"]).sum(-1)
    s2 = (h2 * params["a2"]).sum(-1)
    s3 = (h2 * params["a3"]).sum(-1)
    pi, pj, pk = sec_order_edge_index
    mask = jnp.zeros((n, n, n), jnp.float32).at[pk, pi, pj].set(1.0)
    zz = s3[:, None, None] + s1[None, :, None] + s2[None, None, :]
    zz = jnp.where(zz > 0, zz, 0.2 * zz)
    zzm = jnp.where(mask > 0, zz, -1e30)
    mmax = zzm.max(axis=(1, 2), keepdims=True)
    pp = jnp.where(mask > 0, jnp.exp(zzm - mmax), 0.0)
    alpha2 = pp / jnp.maximum(pp.sum(axis=(1, 2), keepdims=True), 1e-20)
    return jnp.einsum('kij,ir->kr', alpha2, h2) + params["b2"]


if __name__ == "__main__":
    # Small sizes consistent with PGAT(emb_dim, hidden, repr_dim, head=1)
    N, EMB, HID, REPR = 16, 8, 16, 8

    key = jax.random.PRNGKey(0)
    ks = jax.random.split(key, 12)

    def glorot(k, shape):
        fan_in, fan_out = shape[0], shape[-1]
        scale = jnp.sqrt(2.0 / (fan_in + fan_out))
        return (jax.random.normal(k, shape, jnp.float32) * scale).astype(jnp.float32)

    params = {
        # GATConv(emb_dim, hidden // head, heads=1)
        "w1": glorot(ks[0], (EMB, HID)),
        "a_src": glorot(ks[1], (1, HID)),    # attention vec applied to source node
        "a_dst": glorot(ks[2], (1, HID)),    # attention vec applied to target node
        "b1": 0.1 * jax.random.normal(ks[8], (1, HID), jnp.float32),
        # PAGATConv(hidden, repr_dim, heads=1)
        "w2": glorot(ks[3], (HID, REPR)),
        "a1": glorot(ks[4], (1, REPR)),      # path start node
        "a2": glorot(ks[5], (1, REPR)),      # path middle node
        "a3": glorot(ks[6], (1, REPR)),      # path target node
        "b2": 0.1 * jax.random.normal(ks[9], (1, REPR), jnp.float32),
    }

    # Node features and deterministic graph structure
    x = jax.random.normal(ks[7], (N, EMB), jnp.float32)
    ar = jnp.arange(N)
    edge_index = jnp.stack([
        jnp.concatenate([ar, ar]),                       # sources
        jnp.concatenate([(ar + 1) % N, (ar + 3) % N]),   # targets
    ]).astype(jnp.int32)                                  # [2, 32]
    sec_order_edge_index = jnp.stack([
        jnp.concatenate([ar, ar]),                       # path start i
        jnp.concatenate([(ar + 1) % N, (ar + 3) % N]),   # path middle j
        jnp.concatenate([(ar + 2) % N, (ar + 6) % N]),   # path target k
    ]).astype(jnp.int32)                                  # [3, 32]

    # bk=bi=8 -> a 2x2 grid at N_pad=16, exercising the online-softmax accumulation
    out = pgat_forward(x, edge_index, sec_order_edge_index, params, bk=8, bi=8)
    out = jax.block_until_ready(out)

    ref = _ref_forward(x, edge_index, sec_order_edge_index, params)
    assert out.shape == (N, REPR) and out.dtype == jnp.float32
    max_err = jnp.max(jnp.abs(out - ref))
    assert jnp.allclose(out, ref, rtol=2e-2, atol=2e-2), f"mismatch: max abs err {max_err}"

    print("KERNEL_OK")
</pallas_src>

<mosaic_0001>
module attributes {stable_mosaic.version = 11 : i64} {
  func.func @_gat_proj_kernel(%arg0: i32, %arg1: memref<16x128xf32, #tpu.memory_space<vmem>>, %arg2: memref<128x128xf32, #tpu.memory_space<vmem>>, %arg3: memref<1x128xf32, #tpu.memory_space<vmem>>, %arg4: memref<1x128xf32, #tpu.memory_space<vmem>>, %arg5: memref<16x16xf32, #tpu.memory_space<vmem>>, %arg6: memref<1x128xf32, #tpu.memory_space<vmem>>, %arg7: memref<128x128xf32, #tpu.memory_space<vmem>>, %arg8: memref<1x128xf32, #tpu.memory_space<vmem>>, %arg9: memref<1x128xf32, #tpu.memory_space<vmem>>, %arg10: memref<1x128xf32, #tpu.memory_space<vmem>>, %arg11: memref<16x128xf32, #tpu.memory_space<vmem>>, %arg12: memref<16x1xf32, #tpu.memory_space<vmem>>, %arg13: memref<16x1xf32, #tpu.memory_space<vmem>>, %arg14: memref<16x1xf32, #tpu.memory_space<vmem>>) attributes {dimension_semantics = [#tpu.dimension_semantics<arbitrary>], iteration_bounds = array<i64: 1>, scalar_prefetch = 0 : i64, scratch_operands = 0 : i64, tpu.core_type = #tpu.core_type<tc>, window_params = [{pipeline_mode = #tpu.pipeline_mode<synchronous>, transform_indices = @transform_0, window_bounds = array<i64: 16, 128>}, {pipeline_mode = #tpu.pipeline_mode<synchronous>, transform_indices = @transform_1, window_bounds = array<i64: 128, 128>}, {pipeline_mode = #tpu.pipeline_mode<synchronous>, transform_indices = @transform_2, window_bounds = array<i64: 1, 128>}, {pipeline_mode = #tpu.pipeline_mode<synchronous>, transform_indices = @transform_3, window_bounds = array<i64: 1, 128>}, {pipeline_mode = #tpu.pipeline_mode<synchronous>, transform_indices = @transform_4, window_bounds = array<i64: 16, 16>}, {pipeline_mode = #tpu.pipeline_mode<synchronous>, transform_indices = @transform_5, window_bounds = array<i64: 1, 128>}, {pipeline_mode = #tpu.pipeline_mode<synchronous>, transform_indices = @transform_6, window_bounds = array<i64: 128, 128>}, {pipeline_mode = #tpu.pipeline_mode<synchronous>, transform_indices = @transform_7, window_bounds = array<i64: 1, 128>}, {pipeline_mode = #tpu.pipeline_mode<synchronous>, transform_indices = @transform_8, window_bounds = array<i64: 1, 128>}, {pipeline_mode = #tpu.pipeline_mode<synchronous>, transform_indices = @transform_9, window_bounds = array<i64: 1, 128>}, {pipeline_mode = #tpu.pipeline_mode<synchronous>, transform_indices = @transform_10, window_bounds = array<i64: 16, 128>}, {pipeline_mode = #tpu.pipeline_mode<synchronous>, transform_indices = @transform_11, window_bounds = array<i64: 16, 1>}, {pipeline_mode = #tpu.pipeline_mode<synchronous>, transform_indices = @transform_12, window_bounds = array<i64: 16, 1>}, {pipeline_mode = #tpu.pipeline_mode<synchronous>, transform_indices = @transform_13, window_bounds = array<i64: 16, 1>}]} {
    %c0 = arith.constant 0 : index
    %c0_0 = arith.constant 0 : index
    %0 = vector.load %arg1[%c0, %c0_0] : memref<16x128xf32, #tpu.memory_space<vmem>>, vector<16x128xf32>
    %c0_1 = arith.constant 0 : index
    %c0_2 = arith.constant 0 : index
    %1 = vector.load %arg2[%c0_1, %c0_2] : memref<128x128xf32, #tpu.memory_space<vmem>>, vector<128x128xf32>
    %cst = arith.constant dense<0.000000e+00> : vector<16x128xf32>
    %2 = tpu.matmul %0, %1, %cst {dimension_numbers = #tpu.dot_dimension_numbers<[1], [0], [0], [1], [0, 0, 1, 1], [], []>} : vector<16x128xf32>, vector<128x128xf32>, vector<16x128xf32> -> vector<16x128xf32>
    %c0_3 = arith.constant 0 : index
    %c0_4 = arith.constant 0 : index
    %3 = vector.load %arg4[%c0_3, %c0_4] : memref<1x128xf32, #tpu.memory_space<vmem>>, vector<1x128xf32>
    %4 = vector.broadcast %3 : vector<1x128xf32> to vector<16x128xf32>
    %5 = arith.mulf %2, %4 : vector<16x128xf32>
    %cst_5 = arith.constant dense<0.000000e+00> : vector<16xf32>
    %6 = vector.multi_reduction <add>, %5, %cst_5 [1] : vector<16x128xf32> to vector<16xf32>
    %7 = vector.shape_cast %6 : vector<16xf32> to vector<16x1xf32>
    %c0_6 = arith.constant 0 : index
    %c0_7 = arith.constant 0 : index
    %8 = vector.load %arg3[%c0_6, %c0_7] : memref<1x128xf32, #tpu.memory_space<vmem>>, vector<1x128xf32>
    %cst_8 = arith.constant dense<0.000000e+00> : vector<1x16xf32>
    %9 = tpu.matmul %8, %2, %cst_8 {dimension_numbers = #tpu.dot_dimension_numbers<[1], [1], [0], [0], [0, 0, 1, 0], [], []>} : vector<1x128xf32>, vector<16x128xf32>, vector<1x16xf32> -> vector<1x16xf32>
    %10 = vector.broadcast %7 : vector<16x1xf32> to vector<16x16xf32>
    %11 = vector.broadcast %9 : vector<1x16xf32> to vector<16x16xf32>
    %12 = arith.addf %10, %11 : vector<16x16xf32>
    %cst_9 = arith.constant 0.000000e+00 : f32
    %13 = vector.broadcast %cst_9 : f32 to vector<16x16xf32>
    %14 = arith.cmpf ogt, %12, %13 : vector<16x16xf32>
    %cst_10 = arith.constant 2.000000e-01 : f32
    %15 = vector.broadcast %cst_10 : f32 to vector<16x16xf32>
    %16 = arith.mulf %15, %12 : vector<16x16xf32>
    %17 = arith.select %14, %12, %16 : vector<16x16xi1>, vector<16x16xf32>
    %c0_11 = arith.constant 0 : index
    %c0_12 = arith.constant 0 : index
    %18 = vector.load %arg5[%c0_11, %c0_12] : memref<16x16xf32, #tpu.memory_space<vmem>>, vector<16x16xf32>
    %cst_13 = arith.constant 0.000000e+00 : f32
    %19 = vector.broadcast %cst_13 : f32 to vector<16x16xf32>
    %20 = arith.cmpf ogt, %18, %19 : vector<16x16xf32>
    %cst_14 = arith.constant -1.000000e+30 : f32
    %21 = vector.broadcast %cst_14 : f32 to vector<16x16xf32>
    %22 = arith.select %20, %17, %21 : vector<16x16xi1>, vector<16x16xf32>
    %cst_15 = arith.constant dense<0xFF800000> : vector<16xf32>
    %23 = vector.multi_reduction <maximumf>, %22, %cst_15 [1] : vector<16x16xf32> to vector<16xf32>
    %24 = vector.shape_cast %23 : vector<16xf32> to vector<16x1xf32>
    %cst_16 = arith.constant 0.000000e+00 : f32
    %25 = vector.broadcast %cst_16 : f32 to vector<16x16xf32>
    %26 = arith.cmpf ogt, %18, %25 : vector<16x16xf32>
    %27 = vector.broadcast %24 : vector<16x1xf32> to vector<16x16xf32>
    %28 = arith.subf %22, %27 : vector<16x16xf32>
    %29 = math.exp %28 : vector<16x16xf32>
    %cst_17 = arith.constant 0.000000e+00 : f32
    %30 = vector.broadcast %cst_17 : f32 to vector<16x16xf32>
    %31 = arith.select %26, %29, %30 : vector<16x16xi1>, vector<16x16xf32>
    %cst_18 = arith.constant dense<0.000000e+00> : vector<16xf32>
    %32 = vector.multi_reduction <add>, %31, %cst_18 [1] : vector<16x16xf32> to vector<16xf32>
    %33 = vector.shape_cast %32 : vector<16xf32> to vector<16x1xf32>
    %cst_19 = arith.constant 9.99999968E-21 : f32
    %34 = vector.broadcast %cst_19 : f32 to vector<16x1xf32>
    %35 = arith.maximumf %33, %34 : vector<16x1xf32>
    %36 = tpu.reciprocal %35 {approx = true} : vector<16x1xf32> -> vector<16x1xf32>
    %37 = vector.broadcast %36 : vector<16x1xf32> to vector<16x16xf32>
    %38 = arith.mulf %31, %37 : vector<16x16xf32>
    %cst_20 = arith.constant dense<0.000000e+00> : vector<16x128xf32>
    %39 = tpu.matmul %38, %2, %cst_20 {dimension_numbers = #tpu.dot_dimension_numbers<[1], [0], [0], [1], [0, 0, 1, 1], [], []>} : vector<16x16xf32>, vector<16x128xf32>, vector<16x128xf32> -> vector<16x128xf32>
    %c0_21 = arith.constant 0 : index
    %c0_22 = arith.constant 0 : index
    %40 = vector.load %arg6[%c0_21, %c0_22] : memref<1x128xf32, #tpu.memory_space<vmem>>, vector<1x128xf32>
    %41 = vector.broadcast %40 : vector<1x128xf32> to vector<16x128xf32>
    %42 = arith.addf %39, %41 : vector<16x128xf32>
    %cst_23 = arith.constant 0.000000e+00 : f32
    %43 = vector.broadcast %cst_23 : f32 to vector<16x128xf32>
    %44 = arith.maximumf %42, %43 : vector<16x128xf32>
    %c0_24 = arith.constant 0 : index
    %c0_25 = arith.constant 0 : index
    %45 = vector.load %arg7[%c0_24, %c0_25] : memref<128x128xf32, #tpu.memory_space<vmem>>, vector<128x128xf32>
    %cst_26 = arith.constant dense<0.000000e+00> : vector<16x128xf32>
    %46 = tpu.matmul %44, %45, %cst_26 {dimension_numbers = #tpu.dot_dimension_numbers<[1], [0], [0], [1], [0, 0, 1, 1], [], []>} : vector<16x128xf32>, vector<128x128xf32>, vector<16x128xf32> -> vector<16x128xf32>
    %c0_27 = arith.constant 0 : index
    %c0_28 = arith.constant 0 : index
    %47 = vector.load %arg11[%c0_27, %c0_28] : memref<16x128xf32, #tpu.memory_space<vmem>>, vector<16x128xf32>
    tpu.vector_store %arg11[%c0_27, %c0_28], %46 {strides = array<i32>} : memref<16x128xf32, #tpu.memory_space<vmem>>, vector<16x128xf32>,
    %c0_29 = arith.constant 0 : index
    %c0_30 = arith.constant 0 : index
    %48 = vector.load %arg8[%c0_29, %c0_30] : memref<1x128xf32, #tpu.memory_space<vmem>>, vector<1x128xf32>
    %49 = vector.broadcast %48 : vector<1x128xf32> to vector<16x128xf32>
    %50 = arith.mulf %46, %49 : vector<16x128xf32>
    %cst_31 = arith.constant dense<0.000000e+00> : vector<16xf32>
    %51 = vector.multi_reduction <add>, %50, %cst_31 [1] : vector<16x128xf32> to vector<16xf32>
    %52 = vector.shape_cast %51 : vector<16xf32> to vector<16x1xf32>
    %c0_32 = arith.constant 0 : index
    %c0_33 = arith.constant 0 : index
    %53 = vector.load %arg12[%c0_32, %c0_33] : memref<16x1xf32, #tpu.memory_space<vmem>>, vector<16x1xf32>
    tpu.vector_store %arg12[%c0_32, %c0_33], %52 {strides = array<i32>} : memref<16x1xf32, #tpu.memory_space<vmem>>, vector<16x1xf32>,
    %c0_34 = arith.constant 0 : index
    %c0_35 = arith.constant 0 : index
    %54 = vector.load %arg9[%c0_34, %c0_35] : memref<1x128xf32, #tpu.memory_space<vmem>>, vector<1x128xf32>
    %55 = vector.broadcast %54 : vector<1x128xf32> to vector<16x128xf32>
    %56 = arith.mulf %46, %55 : vector<16x128xf32>
    %cst_36 = arith.constant dense<0.000000e+00> : vector<16xf32>
    %57 = vector.multi_reduction <add>, %56, %cst_36 [1] : vector<16x128xf32> to vector<16xf32>
    %58 = vector.shape_cast %57 : vector<16xf32> to vector<16x1xf32>
    %c0_37 = arith.constant 0 : index
    %c0_38 = arith.constant 0 : index
    %59 = vector.load %arg13[%c0_37, %c0_38] : memref<16x1xf32, #tpu.memory_space<vmem>>, vector<16x1xf32>
    tpu.vector_store %arg13[%c0_37, %c0_38], %58 {strides = array<i32>} : memref<16x1xf32, #tpu.memory_space<vmem>>, vector<16x1xf32>,
    %c0_39 = arith.constant 0 : index
    %c0_40 = arith.constant 0 : index
    %60 = vector.load %arg10[%c0_39, %c0_40] : memref<1x128xf32, #tpu.memory_space<vmem>>, vector<1x128xf32>
    %61 = vector.broadcast %60 : vector<1x128xf32> to vector<16x128xf32>
    %62 = arith.mulf %46, %61 : vector<16x128xf32>
    %cst_41 = arith.constant dense<0.000000e+00> : vector<16xf32>
    %63 = vector.multi_reduction <add>, %62, %cst_41 [1] : vector<16x128xf32> to vector<16xf32>
    %64 = vector.shape_cast %63 : vector<16xf32> to vector<16x1xf32>
    %c0_42 = arith.constant 0 : index
    %c0_43 = arith.constant 0 : index
    %65 = vector.load %arg14[%c0_42, %c0_43] : memref<16x1xf32, #tpu.memory_space<vmem>>, vector<16x1xf32>
    tpu.vector_store %arg14[%c0_42, %c0_43], %64 {strides = array<i32>} : memref<16x1xf32, #tpu.memory_space<vmem>>, vector<16x1xf32>,
    return
  }
  func.func @transform_0(%arg0: i32) -> (i32, i32) {
    %c0_i32 = arith.constant 0 : i32
    %c0_i32_0 = arith.constant 0 : i32
    %c0_i32_1 = arith.constant 0 : i32
    return %c0_i32, %c0_i32_0 : i32, i32
  }
  func.func @transform_1(%arg0: i32) -> (i32, i32) {
    %c0_i32 = arith.constant 0 : i32
    %c0_i32_0 = arith.constant 0 : i32
    %c0_i32_1 = arith.constant 0 : i32
    return %c0_i32, %c0_i32_0 : i32, i32
  }
  func.func @transform_2(%arg0: i32) -> (i32, i32) {
    %c0_i32 = arith.constant 0 : i32
    %c0_i32_0 = arith.constant 0 : i32
    %c0_i32_1 = arith.constant 0 : i32
    return %c0_i32, %c0_i32_0 : i32, i32
  }
  func.func @transform_3(%arg0: i32) -> (i32, i32) {
    %c0_i32 = arith.constant 0 : i32
    %c0_i32_0 = arith.constant 0 : i32
    %c0_i32_1 = arith.constant 0 : i32
    return %c0_i32, %c0_i32_0 : i32, i32
  }
  func.func @transform_4(%arg0: i32) -> (i32, i32) {
    %c0_i32 = arith.constant 0 : i32
    %c0_i32_0 = arith.constant 0 : i32
    %c0_i32_1 = arith.constant 0 : i32
    return %c0_i32, %c0_i32_0 : i32, i32
  }
  func.func @transform_5(%arg0: i32) -> (i32, i32) {
    %c0_i32 = arith.constant 0 : i32
    %c0_i32_0 = arith.constant 0 : i32
    %c0_i32_1 = arith.constant 0 : i32
    return %c0_i32, %c0_i32_0 : i32, i32
  }
  func.func @transform_6(%arg0: i32) -> (i32, i32) {
    %c0_i32 = arith.constant 0 : i32
    %c0_i32_0 = arith.constant 0 : i32
    %c0_i32_1 = arith.constant 0 : i32
    return %c0_i32, %c0_i32_0 : i32, i32
  }
  func.func @transform_7(%arg0: i32) -> (i32, i32) {
    %c0_i32 = arith.constant 0 : i32
    %c0_i32_0 = arith.constant 0 : i32
    %c0_i32_1 = arith.constant 0 : i32
    return %c0_i32, %c0_i32_0 : i32, i32
  }
  func.func @transform_8(%arg0: i32) -> (i32, i32) {
    %c0_i32 = arith.constant 0 : i32
    %c0_i32_0 = arith.constant 0 : i32
    %c0_i32_1 = arith.constant 0 : i32
    return %c0_i32, %c0_i32_0 : i32, i32
  }
  func.func @transform_9(%arg0: i32) -> (i32, i32) {
    %c0_i32 = arith.constant 0 : i32
    %c0_i32_0 = arith.constant 0 : i32
    %c0_i32_1 = arith.constant 0 : i32
    return %c0_i32, %c0_i32_0 : i32, i32
  }
  func.func @transform_10(%arg0: i32) -> (i32, i32) {
    %c0_i32 = arith.constant 0 : i32
    %c0_i32_0 = arith.constant 0 : i32
    %c0_i32_1 = arith.constant 0 : i32
    return %c0_i32, %c0_i32_0 : i32, i32
  }
  func.func @transform_11(%arg0: i32) -> (i32, i32) {
    %c0_i32 = arith.constant 0 : i32
    %c0_i32_0 = arith.constant 0 : i32
    %c0_i32_1 = arith.constant 0 : i32
    return %c0_i32, %c0_i32_0 : i32, i32
  }
  func.func @transform_12(%arg0: i32) -> (i32, i32) {
    %c0_i32 = arith.constant 0 : i32
    %c0_i32_0 = arith.constant 0 : i32
    %c0_i32_1 = arith.constant 0 : i32
    return %c0_i32, %c0_i32_0 : i32, i32
  }
  func.func @transform_13(%arg0: i32) -> (i32, i32) {
    %c0_i32 = arith.constant 0 : i32
    %c0_i32_0 = arith.constant 0 : i32
    %c0_i32_1 = arith.constant 0 : i32
    return %c0_i32, %c0_i32_0 : i32, i32
  }
}

</mosaic_0001>

<llo_original>
// kernel: tpu_custom_call.1
$region0: #{tpu_custom_call.1}
  #allocation0 [shape = 'u32[]', space=smem, size = 0x4, offset = 0x4, fixed_abs, tag = 'smem constant byte address 0x4 - core index']
  #allocation1 [shape = 'u32[144,128]{1,0:T(1,128)}', space=vmem, size = 0x12000, scoped, tag = 'internal scratch']
  %s0 = inlined_call_operand.hbm [shape: f32[16,128], index: 0, kind: input, shape index: {}]
  %s1 = inlined_call_operand.hbm [shape: f32[128,128], index: 1, kind: input, shape index: {}]
  %s2 = inlined_call_operand.vmem [shape: f32[1,128], index: 2, kind: input, shape index: {}]
  %s3 = inlined_call_operand.vmem [shape: f32[1,128], index: 3, kind: input, shape index: {}]
  %s4 = inlined_call_operand.hbm [shape: f32[16,16], index: 4, kind: input, shape index: {}]
  %s5 = inlined_call_operand.vmem [shape: f32[1,128], index: 5, kind: input, shape index: {}]
  %s6 = inlined_call_operand.hbm [shape: f32[128,128], index: 6, kind: input, shape index: {}]
  %s7 = inlined_call_operand.vmem [shape: f32[1,128], index: 7, kind: input, shape index: {}]
  %s8 = inlined_call_operand.vmem [shape: f32[1,128], index: 8, kind: input, shape index: {}]
  %s9 = inlined_call_operand.vmem [shape: f32[1,128], index: 9, kind: input, shape index: {}]
  %s10 = inlined_call_operand.hbm [shape: f32[16,128], index: 10, kind: output, shape index: {0}]
  %s11 = inlined_call_operand.vmem [shape: f32[16,1], index: 11, kind: output, shape index: {1}]
  %s12 = inlined_call_operand.vmem [shape: f32[16,1], index: 12, kind: output, shape index: {2}]
  %s13 = inlined_call_operand.vmem [shape: f32[16,1], index: 13, kind: output, shape index: {3}]
  %14 = xla_tuple %s10, %s11, %s12, %s13
  %s15 = sld [smem:[#allocation0]]
  $region90: #{tpu_custom_call.1} parent=0
    _
  %s17 = ssub.s32 1, %s15
  %s18 = scalar_select 0, %s17, %s15
  $region1: #{tpu_custom_call.1} parent=0
    #allocation2 [shape = 'u8[8192]{0}', space=vmem, size = 0x2000, scoped, tag = 'input window, operand 0, single buffered']
    #allocation3 [shape = 's32[1]{0}', space=sflag, size = 0x4, scoped, tag = 'scoped memory for tpu_custom_call.1']
    #allocation4 [shape = 's32[1]{0}', space=sflag, size = 0x4, scoped, tag = 'scoped memory for tpu_custom_call.1']
    #allocation5 [shape = 'u8[65536]{0}', space=vmem, size = 0x10000, scoped, tag = 'input window, operand 1, single buffered']
    #allocation6 [shape = 's32[1]{0}', space=sflag, size = 0x4, scoped, tag = 'scoped memory for tpu_custom_call.1']
    #allocation7 [shape = 'u8[8192]{0}', space=vmem, size = 0x2000, scoped, tag = 'input window, operand 4, single buffered']
    #allocation8 [shape = 'u8[65536]{0}', space=vmem, size = 0x10000, scoped, tag = 'input window, operand 6, single buffered']
    #allocation9 [shape = 's32[1]{0}', space=sflag, size = 0x4, scoped, tag = 'scoped memory for tpu_custom_call.1']
    #allocation10 [shape = 'u8[8192]{0}', space=vmem, size = 0x2000, scoped, tag = 'output window, operand 0, single buffered']
    %19 = vsyncpa [#allocation3], 0
    %20 = vsyncpa [#allocation6], 0
    %21 = vsyncpa [#allocation9], 0
    %22 = vsyncpa [#allocation4], 0
    // Predicated region
    $region2: #{tpu_custom_call.1} parent=1 // pred_check
      _
    $region3: #{tpu_custom_call.1} parent=1 // pred_check_branch
      %24 = sbr.rel (0) target = $region5
    $region4: #{tpu_custom_call.1} parent=1 // pred_region
      %s26 = ssub.s32 256, 256
      %27 = vsyncadd [#allocation3], %s26
      %s28 = sshll.u32 [#allocation2], 4
      %s29 = int_to_ptr.vmem [resolvable:$true] %s28
      %34 = dma.hbm_to_vmem [thread:$0]  %s0, 256, %s29, [#allocation3], 128, 128, 8
    $region5: #{tpu_custom_call.1} parent=1 // pred_fallthru
      _
    // Predicated region
    $region6: #{tpu_custom_call.1} parent=1 // pred_check
      _
    $region7: #{tpu_custom_call.1} parent=1 // pred_check_branch
      %36 = sbr.rel (0) target = $region9
    $region8: #{tpu_custom_call.1} parent=1 // pred_region
      %s38 = ssub.s32 2048, 2048
      %39 = vsyncadd [#allocation6], %s38
      %s40 = sshll.u32 [#allocation5], 4
      %s41 = int_to_ptr.vmem [resolvable:$true] %s40
      %46 = dma.hbm_to_vmem [thread:$0]  %s1, 2048, %s41, [#allocation6], 128, 128, 8
    $region9: #{tpu_custom_call.1} parent=1 // pred_fallthru
      _
    // Predicated region
    $region10: #{tpu_custom_call.1} parent=1 // pred_check
      _
    $region11: #{tpu_custom_call.1} parent=1 // pred_check_branch
      %48 = sbr.rel (0) target = $region13
    $region12: #{tpu_custom_call.1} parent=1 // pred_region
      _
    $region13: #{tpu_custom_call.1} parent=1 // pred_fallthru
      _
    // Predicated region
    $region14: #{tpu_custom_call.1} parent=1 // pred_check
      _
    $region15: #{tpu_custom_call.1} parent=1 // pred_check_branch
      %50 = sbr.rel (0) target = $region17
    $region16: #{tpu_custom_call.1} parent=1 // pred_region
      _
    $region17: #{tpu_custom_call.1} parent=1 // pred_fallthru
      _
    // Predicated region
    $region18: #{tpu_custom_call.1} parent=1 // pred_check
      _
    $region19: #{tpu_custom_call.1} parent=1 // pred_check_branch
      %52 = sbr.rel (0) target = $region21
    $region20: #{tpu_custom_call.1} parent=1 // pred_region
      %s54 = ssub.s32 256, 256
      %55 = vsyncadd [#allocation6], %s54
      %s56 = sshll.u32 [#allocation7], 4
      %s57 = int_to_ptr.vmem [resolvable:$true] %s56
      %62 = dma.hbm_to_vmem [thread:$0]  %s4, 256, %s57, [#allocation6], 128, 128, 8
    $region21: #{tpu_custom_call.1} parent=1 // pred_fallthru
      _
    // Predicated region
    $region22: #{tpu_custom_call.1} parent=1 // pred_check
      _
    $region23: #{tpu_custom_call.1} parent=1 // pred_check_branch
      %64 = sbr.rel (0) target = $region25
    $region24: #{tpu_custom_call.1} parent=1 // pred_region
      _
    $region25: #{tpu_custom_call.1} parent=1 // pred_fallthru
      _
    // Predicated region
    $region26: #{tpu_custom_call.1} parent=1 // pred_check
      _
    $region27: #{tpu_custom_call.1} parent=1 // pred_check_branch
      %66 = sbr.rel (0) target = $region29
    $region28: #{tpu_custom_call.1} parent=1 // pred_region
      %s68 = ssub.s32 2048, 2048
      %69 = vsyncadd [#allocation9], %s68
      %s70 = sshll.u32 [#allocation8], 4
      %s71 = int_to_ptr.vmem [resolvable:$true] %s70
      %76 = dma.hbm_to_vmem [thread:$0]  %s6, 2048, %s71, [#allocation9], 128, 128, 8
    $region29: #{tpu_custom_call.1} parent=1 // pred_fallthru
      _
    // Predicated region
    $region30: #{tpu_custom_call.1} parent=1 // pred_check
      _
    $region31: #{tpu_custom_call.1} parent=1 // pred_check_branch
      %78 = sbr.rel (0) target = $region33
    $region32: #{tpu_custom_call.1} parent=1 // pred_region
      _
    $region33: #{tpu_custom_call.1} parent=1 // pred_fallthru
      _
    // Predicated region
    $region34: #{tpu_custom_call.1} parent=1 // pred_check
      _
    $region35: #{tpu_custom_call.1} parent=1 // pred_check_branch
      %80 = sbr.rel (0) target = $region37
    $region36: #{tpu_custom_call.1} parent=1 // pred_region
      _
    $region37: #{tpu_custom_call.1} parent=1 // pred_fallthru
      _
    // Predicated region
    $region38: #{tpu_custom_call.1} parent=1 // pred_check
      _
    $region39: #{tpu_custom_call.1} parent=1 // pred_check_branch
      %82 = sbr.rel (0) target = $region41
    $region40: #{tpu_custom_call.1} parent=1 // pred_region
      _
    $region41: #{tpu_custom_call.1} parent=1 // pred_fallthru
      _
    // Predicated region
    $region42: #{tpu_custom_call.1} parent=1 // pred_check
      _
    $region43: #{tpu_custom_call.1} parent=1 // pred_check_branch
      %84 = sbr.rel (0) target = $region45
    $region44: #{tpu_custom_call.1} parent=1 // pred_region
      %85 = dma.done [#allocation3], 256
    $region45: #{tpu_custom_call.1} parent=1 // pred_fallthru
      _
    // Predicated region
    $region46: #{tpu_custom_call.1} parent=1 // pred_check
      _
    $region47: #{tpu_custom_call.1} parent=1 // pred_check_branch
      %87 = sbr.rel (0) target = $region49
    $region48: #{tpu_custom_call.1} parent=1 // pred_region
      %88 = dma.done [#allocation6], 2048
    $region49: #{tpu_custom_call.1} parent=1 // pred_fallthru
      _
    // Predicated region
    $region50: #{tpu_custom_call.1} parent=1 // pred_check
      _
    $region51: #{tpu_custom_call.1} parent=1 // pred_check_branch
      %90 = sbr.rel (0) target = $region53
    $region52: #{tpu_custom_call.1} parent=1 // pred_region
      %91 = dma.done [#allocation6], 256
    $region53: #{tpu_custom_call.1} parent=1 // pred_fallthru
      _
    // Predicated region
    $region54: #{tpu_custom_call.1} parent=1 // pred_check
      _
    $region55: #{tpu_custom_call.1} parent=1 // pred_check_branch
      %93 = sbr.rel (0) target = $region57
    $region56: #{tpu_custom_call.1} parent=1 // pred_region
      %94 = dma.done [#allocation9], 2048
    $region57: #{tpu_custom_call.1} parent=1 // pred_fallthru
      _
    %v95 = vld [vmem:[#allocation2] sm:$0xff]
    %v96 = vld [vmem:[#allocation2 + $0x8] sm:$0xff]
    %v97 = vld [vmem:[#allocation5] sm:$0xff]
    %v98 = vld [vmem:[#allocation5 + $0x8] sm:$0xff]
    %v99 = vld [vmem:[#allocation5 + $0x10] sm:$0xff]
    %v100 = vld [vmem:[#allocation5 + $0x18] sm:$0xff]
    %v101 = vld [vmem:[#allocation5 + $0x20] sm:$0xff]
    %v102 = vld [vmem:[#allocation5 + $0x28] sm:$0xff]
    %v103 = vld [vmem:[#allocation5 + $0x30] sm:$0xff]
    %v104 = vld [vmem:[#allocation5 + $0x38] sm:$0xff]
    %v105 = vld [vmem:[#allocation5 + $0x40] sm:$0xff]
    %v106 = vld [vmem:[#allocation5 + $0x48] sm:$0xff]
    %v107 = vld [vmem:[#allocation5 + $0x50] sm:$0xff]
    %v108 = vld [vmem:[#allocation5 + $0x58] sm:$0xff]
    %v109 = vld [vmem:[#allocation5 + $0x60] sm:$0xff]
    %v110 = vld [vmem:[#allocation5 + $0x68] sm:$0xff]
    %v111 = vld [vmem:[#allocation5 + $0x70] sm:$0xff]
    %v112 = vld [vmem:[#allocation5 + $0x78] sm:$0xff]
    %113 = vmatprep.subr.mxu0 0.0
    %114 = vmatpush1.msra.mxu0 %v112
    %115 = vmatprep.subr.mxu0 0.0
    %116 = vmatpush1.msra.mxu0 %v111
    %117 = vmatprep.subr.mxu0 0.0
    %118 = vmatpush1.msra.mxu0 %v110
    %119 = vmatprep.subr.mxu0 0.0
    %120 = vmatpush1.msra.mxu0 %v109
    %121 = vmatprep.subr.mxu0 0.0
    %122 = vmatpush1.msra.mxu0 %v108
    %123 = vmatprep.subr.mxu0 0.0
    %124 = vmatpush1.msra.mxu0 %v107
    %125 = vmatprep.subr.mxu0 0.0
    %126 = vmatpush1.msra.mxu0 %v106
    %127 = vmatprep.subr.mxu0 0.0
    %128 = vmatpush1.msra.mxu0 %v105
    %129 = vmatprep.subr.mxu0 0.0
    %130 = vmatpush1.msra.mxu0 %v104
    %131 = vmatprep.subr.mxu0 0.0
    %132 = vmatpush1.msra.mxu0 %v103
    %133 = vmatprep.subr.mxu0 0.0
    %134 = vmatpush1.msra.mxu0 %v102
    %135 = vmatprep.subr.mxu0 0.0
    %136 = vmatpush1.msra.mxu0 %v101
    %137 = vmatprep.subr.mxu0 0.0
    %138 = vmatpush1.msra.mxu0 %v100
    %139 = vmatprep.subr.mxu0 0.0
    %140 = vmatpush1.msra.mxu0 %v99
    %141 = vmatprep.subr.mxu0 0.0
    %142 = vmatpush1.msra.mxu0 %v98
    %143 = vmatprep.subr.mxu0 0.0
    %144 = vmatpush1.msra.mxu0 %v97
    %145 = vmatprep.subr.mxu0 0.0
    %146 = vmatpush2.msra.mxu0 0.0
    %147 = vmatprep.subr.mxu0 0.0
    %148 = vmatpush2.msra.mxu0 0.0
    %149 = vmatprep.subr.mxu0 0.0
    %150 = vmatpush2.msra.mxu0 0.0
    %151 = vmatprep.subr.mxu0 0.0
    %152 = vmatpush2.msra.mxu0 0.0
    %153 = vmatprep.subr.mxu0 0.0
    %154 = vmatpush2.msra.mxu0 0.0
    %155 = vmatprep.subr.mxu0 0.0
    %156 = vmatpush2.msra.mxu0 0.0
    %157 = vmatprep.subr.mxu0 0.0
    %158 = vmatpush2.msra.mxu0 0.0
    %159 = vmatprep.subr.mxu0 0.0
    %160 = vmatpush2.msra.mxu0 0.0
    %161 = vmatprep.subr.mxu0 0.0
    %162 = vmatpush2.msra.mxu0 0.0
    %163 = vmatprep.subr.mxu0 0.0
    %164 = vmatpush2.msra.mxu0 0.0
    %165 = vmatprep.subr.mxu0 0.0
    %166 = vmatpush2.msra.mxu0 0.0
    %167 = vmatprep.subr.mxu0 0.0
    %168 = vmatpush2.msra.mxu0 0.0
    %169 = vmatprep.subr.mxu0 0.0
    %170 = vmatpush2.msra.mxu0 0.0
    %171 = vmatprep.subr.mxu0 0.0
    %172 = vmatpush2.msra.mxu0 0.0
    %173 = vmatprep.subr.mxu0 0.0
    %174 = vmatpush2.msra.mxu0 0.0
    %175 = vmatprep.subr.mxu0 0.0
    %176 = vmatpush2.msra.mxu0 0.0
    %177 = vmatprep.mubr.f32.mxu0 0.0
    %178 = vmatmul.mubr.f32.gmra.mxu0 %v95
    %v179 = vpop.f32.mrf.mxu0
    %v180 = vadd.f32 0.0, %v179
    %v181 = vpop.f32.mrf.mxu0
    %182 = vmatprep.mubr.f32.mxu0 0.0
    %183 = vmatmul.mubr.f32.gmra.mxu0 %v96
    %v184 = vpop.f32.mrf.mxu0
    %v185 = vadd.f32 0.0, %v184
    %v186 = vpop.f32.mrf.mxu0
    %187 = vdwg.mxu0
    %v188 = vld [vmem:[%s3] sm:$0x1]
    %v190 = vlaneseq
    %v191 = vshrl.u32 %v190, 7
    %v192 = vsub.s32 0, %v191
    %v193 = vrot.slane %v188, %v192
    %v195 = vmul.f32 %v180, %v193
    %v196 = vmul.f32 %v185, %v193
    %197 = vadd.xlane.f32.xlu0 %v195
    %v198 = vpop.xlane.xlu0 %197
    %199 = vadd.xlane.f32.xlu0 %v196
    %v200 = vpop.xlane.xlu0 %199
    %v201 = vld [vmem:[%s2] sm:$0x1]
    %202 = vmatprep.subr.mxu0 0.0
    %203 = vmatpush1.xpose.msra.mxu0 0.0
    %204 = vmatprep.subr.mxu0 0.0
    %205 = vmatpush1.xpose.msra.mxu0 0.0
    %206 = vmatprep.subr.mxu0 0.0
    %207 = vmatpush1.xpose.msra.mxu0 0.0
    %208 = vmatprep.subr.mxu0 0.0
    %209 = vmatpush1.xpose.msra.mxu0 0.0
    %210 = vmatprep.subr.mxu0 0.0
    %211 = vmatpush1.xpose.msra.mxu0 0.0
    %212 = vmatprep.subr.mxu0 0.0
    %213 = vmatpush1.xpose.msra.mxu0 0.0
    %214 = vmatprep.subr.mxu0 0.0
    %215 = vmatpush1.xpose.msra.mxu0 0.0
    %216 = vmatprep.subr.mxu0 0.0
    %217 = vmatpush1.xpose.msra.mxu0 0.0
    %218 = vmatprep.subr.mxu0 0.0
    %219 = vmatpush1.xpose.msra.mxu0 0.0
    %220 = vmatprep.subr.mxu0 0.0
    %221 = vmatpush1.xpose.msra.mxu0 0.0
    %222 = vmatprep.subr.mxu0 0.0
    %223 = vmatpush1.xpose.msra.mxu0 0.0
    %224 = vmatprep.subr.mxu0 0.0
    %225 = vmatpush1.xpose.msra.mxu0 0.0
    %226 = vmatprep.subr.mxu0 0.0
    %227 = vmatpush1.xpose.msra.mxu0 0.0
    %228 = vmatprep.subr.mxu0 0.0
    %229 = vmatpush1.xpose.msra.mxu0 0.0
    %230 = vmatprep.subr.mxu0 0.0
    %231 = vmatpush1.xpose.msra.mxu0 %v185
    %232 = vmatprep.subr.mxu0 0.0
    %233 = vmatpush1.xpose.msra.mxu0 %v180
    %234 = vmatprep.subr.mxu0 0.0
    %235 = vmatpush2.xpose.msra.mxu0 0.0
    %236 = vmatprep.subr.mxu0 0.0
    %237 = vmatpush2.xpose.msra.mxu0 0.0
    %238 = vmatprep.subr.mxu0 0.0
    %239 = vmatpush2.xpose.msra.mxu0 0.0
    %240 = vmatprep.subr.mxu0 0.0
    %241 = vmatpush2.xpose.msra.mxu0 0.0
    %242 = vmatprep.subr.mxu0 0.0
    %243 = vmatpush2.xpose.msra.mxu0 0.0
    %244 = vmatprep.subr.mxu0 0.0
    %245 = vmatpush2.xpose.msra.mxu0 0.0
    %246 = vmatprep.subr.mxu0 0.0
    %247 = vmatpush2.xpose.msra.mxu0 0.0
    %248 = vmatprep.subr.mxu0 0.0
    %249 = vmatpush2.xpose.msra.mxu0 0.0
    %250 = vmatprep.subr.mxu0 0.0
    %251 = vmatpush2.xpose.msra.mxu0 0.0
    %252 = vmatprep.subr.mxu0 0.0
    %253 = vmatpush2.xpose.msra.mxu0 0.0
    %254 = vmatprep.subr.mxu0 0.0
    %255 = vmatpush2.xpose.msra.mxu0 0.0
    %256 = vmatprep.subr.mxu0 0.0
    %257 = vmatpush2.xpose.msra.mxu0 0.0
    %258 = vmatprep.subr.mxu0 0.0
    %259 = vmatpush2.xpose.msra.mxu0 0.0
    %260 = vmatprep.subr.mxu0 0.0
    %261 = vmatpush2.xpose.msra.mxu0 0.0
    %262 = vmatprep.subr.mxu0 0.0
    %263 = vmatpush2.xpose.msra.mxu0 0.0
    %264 = vmatprep.subr.mxu0 0.0
    %265 = vmatpush2.xpose.msra.mxu0 0.0
    %266 = vmatprep.mubr.f32.mxu0 0.0
    %267 = vmatmul.mubr.f32.gmra.mxu0 %v201
    %v268 = vpop.f32.mrf.mxu0
    %v269 = vadd.f32 0.0, %v268
    %v270 = vpop.f32.mrf.mxu0
    %271 = vdwg.mxu0
    %v272 = vlaneseq
    %v273 = vshrl.u32 %v272, 7
    %v274 = vsub.s32 0, %v273
    %v275 = vrot.slane %v269, %v274
    %v276 = vadd.f32 %v198, %v275
    %v277 = vadd.f32 %v200, %v275
    %vm278 = vcmp.gt.f32.partialorder %v276, 0.0
    %vm279 = vcmp.gt.f32.partialorder %v277, 0.0
    %v280 = vmul.f32 %v276, 0.2
    %v281 = vmul.f32 %v277, 0.2
    %v282 = vsel %vm278, %v276, %v280
    %v283 = vsel %vm279, %v277, %v281
    %v284 = vld [vmem:[#allocation7] sm:$0xff]
    %v285 = vld [vmem:[#allocation7 + $0x8] sm:$0xff]
    %vm286 = vcmp.gt.f32.partialorder %v284, 0.0
    %vm287 = vcmp.gt.f32.partialorder %v285, 0.0
    %v288 = vsel %vm286, %v282, -1e+30
    %v289 = vsel %vm287, %v283, -1e+30
    %vm290 = vcmask 130048
    %v291 = vsel %vm290, %v288, -inf
    %292 = vmax.xlane.f32.xlu0 %v291
    %v293 = vpop.xlane.xlu0 %292
    %v294 = vsel %vm290, %v289, -inf
    %295 = vmax.xlane.f32.xlu0 %v294
    %v296 = vpop.xlane.xlu0 %295
    %v297 = vsub.f32 %v288, %v293
    %v298 = vsub.f32 %v289, %v296
    %v299 = vmul.f32 %v297, 1.442695
    %v300 = vpow.pop %v299
    %v301 = vmul.f32 %v298, 1.442695
    %v302 = vpow.pop %v301
    %v303 = vsel %vm286, %v300, 0.0
    %v304 = vsel %vm287, %v302, 0.0
    %v305 = vsel %vm290, %v303, 0.0
    %306 = vadd.xlane.f32.xlu0 %v305
    %v307 = vpop.xlane.xlu0 %306
    %v308 = vsel %vm290, %v304, 0.0
    %309 = vadd.xlane.f32.xlu0 %v308
    %v310 = vpop.xlane.xlu0 %309
    %v311 = vmax.f32 %v307, 1e-20
    %v312 = vmax.f32 %v310, 1e-20
    %v313 = vrcp.pop %v311
    %v314 = vrcp.pop %v312
    %v315 = vmul.f32 %v303, %v313
    %v316 = vmul.f32 %v304, %v314
    %v317 = vld [vmem:[%s5] sm:$0x1]
    %v319 = vlaneseq
    %v320 = vshrl.u32 %v319, 7
    %v321 = vsub.s32 0, %v320
    %v322 = vrot.slane %v317, %v321
    %v325 = vsel %vm290, %v315, 0
    %v328 = vsel %vm290, %v316, 0
    %330 = vmatprep.subr.mxu0 0.0
    %331 = vmatpush1.msra.mxu0 0.0
    %332 = vmatprep.subr.mxu0 0.0
    %333 = vmatpush1.msra.mxu0 0.0
    %334 = vmatprep.subr.mxu0 0.0
    %335 = vmatpush1.msra.mxu0 0.0
    %336 = vmatprep.subr.mxu0 0.0
    %337 = vmatpush1.msra.mxu0 0.0
    %338 = vmatprep.subr.mxu0 0.0
    %339 = vmatpush1.msra.mxu0 0.0
    %340 = vmatprep.subr.mxu0 0.0
    %341 = vmatpush1.msra.mxu0 0.0
    %342 = vmatprep.subr.mxu0 0.0
    %343 = vmatpush1.msra.mxu0 0.0
    %344 = vmatprep.subr.mxu0 0.0
    %345 = vmatpush1.msra.mxu0 0.0
    %346 = vmatprep.subr.mxu0 0.0
    %347 = vmatpush1.msra.mxu0 0.0
    %348 = vmatprep.subr.mxu0 0.0
    %349 = vmatpush1.msra.mxu0 0.0
    %350 = vmatprep.subr.mxu0 0.0
    %351 = vmatpush1.msra.mxu0 0.0
    %352 = vmatprep.subr.mxu0 0.0
    %353 = vmatpush1.msra.mxu0 0.0
    %354 = vmatprep.subr.mxu0 0.0
    %355 = vmatpush1.msra.mxu0 0.0
    %356 = vmatprep.subr.mxu0 0.0
    %357 = vmatpush1.msra.mxu0 0.0
    %358 = vmatprep.subr.mxu0 0.0
    %359 = vmatpush1.msra.mxu0 %v185
    %360 = vmatprep.subr.mxu0 0.0
    %361 = vmatpush1.msra.mxu0 %v180
    %362 = vmatprep.subr.mxu0 0.0
    %363 = vmatpush2.msra.mxu0 0.0
    %364 = vmatprep.subr.mxu0 0.0
    %365 = vmatpush2.msra.mxu0 0.0
    %366 = vmatprep.subr.mxu0 0.0
    %367 = vmatpush2.msra.mxu0 0.0
    %368 = vmatprep.subr.mxu0 0.0
    %369 = vmatpush2.msra.mxu0 0.0
    %370 = vmatprep.subr.mxu0 0.0
    %371 = vmatpush2.msra.mxu0 0.0
    %372 = vmatprep.subr.mxu0 0.0
    %373 = vmatpush2.msra.mxu0 0.0
    %374 = vmatprep.subr.mxu0 0.0
    %375 = vmatpush2.msra.mxu0 0.0
    %376 = vmatprep.subr.mxu0 0.0
    %377 = vmatpush2.msra.mxu0 0.0
    %378 = vmatprep.subr.mxu0 0.0
    %379 = vmatpush2.msra.mxu0 0.0
    %380 = vmatprep.subr.mxu0 0.0
    %381 = vmatpush2.msra.mxu0 0.0
    %382 = vmatprep.subr.mxu0 0.0
    %383 = vmatpush2.msra.mxu0 0.0
    %384 = vmatprep.subr.mxu0 0.0
    %385 = vmatpush2.msra.mxu0 0.0
    %386 = vmatprep.subr.mxu0 0.0
    %387 = vmatpush2.msra.mxu0 0.0
    %388 = vmatprep.subr.mxu0 0.0
    %389 = vmatpush2.msra.mxu0 0.0
    %390 = vmatprep.subr.mxu0 0.0
    %391 = vmatpush2.msra.mxu0 0.0
    %392 = vmatprep.subr.mxu0 0.0
    %393 = vmatpush2.msra.mxu0 0.0
    %394 = vmatprep.mubr.f32.mxu0 0.0
    %395 = vmatmul.mubr.f32.gmra.mxu0 %v325
    %v396 = vpop.f32.mrf.mxu0
    %v397 = vadd.f32 %v322, %v396
    %v398 = vpop.f32.mrf.mxu0
    %399 = vmatprep.mubr.f32.mxu0 0.0
    %400 = vmatmul.mubr.f32.gmra.mxu0 %v328
    %v401 = vpop.f32.mrf.mxu0
    %v402 = vadd.f32 %v322, %v401
    %v403 = vpop.f32.mrf.mxu0
    %404 = vdwg.mxu0
    %v405 = vmax.f32 %v397, 0.0
    %v406 = vmax.f32 %v402, 0.0
    %v407 = vld [vmem:[#allocation8] sm:$0xff]
    %v408 = vld [vmem:[#allocation8 + $0x8] sm:$0xff]
    %v409 = vld [vmem:[#allocation8 + $0x10] sm:$0xff]
    %v410 = vld [vmem:[#allocation8 + $0x18] sm:$0xff]
    %v411 = vld [vmem:[#allocation8 + $0x20] sm:$0xff]
    %v412 = vld [vmem:[#allocation8 + $0x28] sm:$0xff]
    %v413 = vld [vmem:[#allocation8 + $0x30] sm:$0xff]
    %v414 = vld [vmem:[#allocation8 + $0x38] sm:$0xff]
    %v415 = vld [vmem:[#allocation8 + $0x40] sm:$0xff]
    %v416 = vld [vmem:[#allocation8 + $0x48] sm:$0xff]
    %v417 = vld [vmem:[#allocation8 + $0x50] sm:$0xff]
    %v418 = vld [vmem:[#allocation8 + $0x58] sm:$0xff]
    %v419 = vld [vmem:[#allocation8 + $0x60] sm:$0xff]
    %v420 = vld [vmem:[#allocation8 + $0x68] sm:$0xff]
    %v421 = vld [vmem:[#allocation8 + $0x70] sm:$0xff]
    %v422 = vld [vmem:[#allocation8 + $0x78] sm:$0xff]
    %423 = vmatprep.subr.mxu0 0.0
    %424 = vmatpush1.msra.mxu0 %v422
    %425 = vmatprep.subr.mxu0 0.0
    %426 = vmatpush1.msra.mxu0 %v421
    %427 = vmatprep.subr.mxu0 0.0
    %428 = vmatpush1.msra.mxu0 %v420
    %429 = vmatprep.subr.mxu0 0.0
    %430 = vmatpush1.msra.mxu0 %v419
    %431 = vmatprep.subr.mxu0 0.0
    %432 = vmatpush1.msra.mxu0 %v418
    %433 = vmatprep.subr.mxu0 0.0
    %434 = vmatpush1.msra.mxu0 %v417
    %435 = vmatprep.subr.mxu0 0.0
    %436 = vmatpush1.msra.mxu0 %v416
    %437 = vmatprep.subr.mxu0 0.0
    %438 = vmatpush1.msra.mxu0 %v415
    %439 = vmatprep.subr.mxu0 0.0
    %440 = vmatpush1.msra.mxu0 %v414
    %441 = vmatprep.subr.mxu0 0.0
    %442 = vmatpush1.msra.mxu0 %v413
    %443 = vmatprep.subr.mxu0 0.0
    %444 = vmatpush1.msra.mxu0 %v412
    %445 = vmatprep.subr.mxu0 0.0
    %446 = vmatpush1.msra.mxu0 %v411
    %447 = vmatprep.subr.mxu0 0.0
    %448 = vmatpush1.msra.mxu0 %v410
    %449 = vmatprep.subr.mxu0 0.0
    %450 = vmatpush1.msra.mxu0 %v409
    %451 = vmatprep.subr.mxu0 0.0
    %452 = vmatpush1.msra.mxu0 %v408
    %453 = vmatprep.subr.mxu0 0.0
    %454 = vmatpush1.msra.mxu0 %v407
    %455 = vmatprep.subr.mxu0 0.0
    %456 = vmatpush2.msra.mxu0 0.0
    %457 = vmatprep.subr.mxu0 0.0
    %458 = vmatpush2.msra.mxu0 0.0
    %459 = vmatprep.subr.mxu0 0.0
    %460 = vmatpush2.msra.mxu0 0.0
    %461 = vmatprep.subr.mxu0 0.0
    %462 = vmatpush2.msra.mxu0 0.0
    %463 = vmatprep.subr.mxu0 0.0
    %464 = vmatpush2.msra.mxu0 0.0
    %465 = vmatprep.subr.mxu0 0.0
    %466 = vmatpush2.msra.mxu0 0.0
    %467 = vmatprep.subr.mxu0 0.0
    %468 = vmatpush2.msra.mxu0 0.0
    %469 = vmatprep.subr.mxu0 0.0
    %470 = vmatpush2.msra.mxu0 0.0
    %471 = vmatprep.subr.mxu0 0.0
    %472 = vmatpush2.msra.mxu0 0.0
    %473 = vmatprep.subr.mxu0 0.0
    %474 = vmatpush2.msra.mxu0 0.0
    %475 = vmatprep.subr.mxu0 0.0
    %476 = vmatpush2.msra.mxu0 0.0
    %477 = vmatprep.subr.mxu0 0.0
    %478 = vmatpush2.msra.mxu0 0.0
    %479 = vmatprep.subr.mxu0 0.0
    %480 = vmatpush2.msra.mxu0 0.0
    %481 = vmatprep.subr.mxu0 0.0
    %482 = vmatpush2.msra.mxu0 0.0
    %483 = vmatprep.subr.mxu0 0.0
    %484 = vmatpush2.msra.mxu0 0.0
    %485 = vmatprep.subr.mxu0 0.0
    %486 = vmatpush2.msra.mxu0 0.0
    %487 = vmatprep.mubr.f32.mxu0 0.0
    %488 = vmatmul.mubr.f32.gmra.mxu0 %v405
    %v489 = vpop.f32.mrf.mxu0
    %v490 = vadd.f32 0.0, %v489
    %v491 = vpop.f32.mrf.mxu0
    %492 = vmatprep.mubr.f32.mxu0 0.0
    %493 = vmatmul.mubr.f32.gmra.mxu0 %v406
    %v494 = vpop.f32.mrf.mxu0
    %v495 = vadd.f32 0.0, %v494
    %v496 = vpop.f32.mrf.mxu0
    %497 = vdwg.mxu0
    %498 = vst [vmem:[#allocation10] sm:$0xff] %v490
    %499 = vst [vmem:[#allocation10 + $0x8] sm:$0xff] %v495
    %v500 = vld [vmem:[%s7] sm:$0x1]
    %v502 = vlaneseq
    %v503 = vshrl.u32 %v502, 7
    %v504 = vsub.s32 0, %v503
    %v505 = vrot.slane %v500, %v504
    %v507 = vmul.f32 %v490, %v505
    %v508 = vmul.f32 %v495, %v505
    %509 = vadd.xlane.f32.xlu0 %v507
    %v510 = vpop.xlane.xlu0 %509
    %511 = vadd.xlane.f32.xlu0 %v508
    %v512 = vpop.xlane.xlu0 %511
    %vm513 = vcmask 7168
    %514 = vst.msk [vmem:[%s11] sm:$0xff] %vm513, %v510
    %515 = vst.msk [vmem:[%s11 + $0x8] sm:$0xff] %vm513, %v512
    %v516 = vld [vmem:[%s8] sm:$0x1]
    %v518 = vlaneseq
    %v519 = vshrl.u32 %v518, 7
    %v520 = vsub.s32 0, %v519
    %v521 = vrot.slane %v516, %v520
    %v523 = vmul.f32 %v490, %v521
    %v524 = vmul.f32 %v495, %v521
    %525 = vadd.xlane.f32.xlu0 %v523
    %v526 = vpop.xlane.xlu0 %525
    %527 = vadd.xlane.f32.xlu0 %v524
    %v528 = vpop.xlane.xlu0 %527
    %529 = vst.msk [vmem:[%s12] sm:$0xff] %vm513, %v526
    %530 = vst.msk [vmem:[%s12 + $0x8] sm:$0xff] %vm513, %v528
    %v531 = vld [vmem:[%s9] sm:$0x1]
    %v533 = vlaneseq
    %v534 = vshrl.u32 %v533, 7
    %v535 = vsub.s32 0, %v534
    %v536 = vrot.slane %v531, %v535
    %v538 = vmul.f32 %v490, %v536
    %v539 = vmul.f32 %v495, %v536
    %540 = vadd.xlane.f32.xlu0 %v538
    %v541 = vpop.xlane.xlu0 %540
    %542 = vadd.xlane.f32.xlu0 %v539
    %v543 = vpop.xlane.xlu0 %542
    %544 = vst.msk [vmem:[%s13] sm:$0xff] %vm513, %v541
    %545 = vst.msk [vmem:[%s13 + $0x8] sm:$0xff] %vm513, %v543
    // Predicated region
    $region58: #{tpu_custom_call.1} parent=1 // pred_check
      _
    $region59: #{tpu_custom_call.1} parent=1 // pred_check_branch
      %547 = sbr.rel (0) target = $region61
    $region60: #{tpu_custom_call.1} parent=1 // pred_region
      %s549 = ssub.s32 256, 256
      %550 = vsyncadd [#allocation4], %s549
      %s551 = sshll.u32 [#allocation10], 4
      %s552 = int_to_ptr.vmem [resolvable:$true] %s551
      %557 = dma.vmem_to_hbm [thread:$0]  %s552, 256, %s10, [#allocation4], 128, 128, 8
    $region61: #{tpu_custom_call.1} parent=1 // pred_fallthru
      _
    // Predicated region
    $region62: #{tpu_custom_call.1} parent=1 // pred_check
      _
    $region63: #{tpu_custom_call.1} parent=1 // pred_check_branch
      %559 = sbr.rel (0) target = $region65
    $region64: #{tpu_custom_call.1} parent=1 // pred_region
      _
    $region65: #{tpu_custom_call.1} parent=1 // pred_fallthru
      _
    // Predicated region
    $region66: #{tpu_custom_call.1} parent=1 // pred_check
      _
    $region67: #{tpu_custom_call.1} parent=1 // pred_check_branch
      %561 = sbr.rel (0) target = $region69
    $region68: #{tpu_custom_call.1} parent=1 // pred_region
      _
    $region69: #{tpu_custom_call.1} parent=1 // pred_fallthru
      _
    // Predicated region
    $region70: #{tpu_custom_call.1} parent=1 // pred_check
      _
    $region71: #{tpu_custom_call.1} parent=1 // pred_check_branch
      %563 = sbr.rel (0) target = $region73
    $region72: #{tpu_custom_call.1} parent=1 // pred_region
      _
    $region73: #{tpu_custom_call.1} parent=1 // pred_fallthru
      _
    // Predicated region
    $region74: #{tpu_custom_call.1} parent=1 // pred_check
      _
    $region75: #{tpu_custom_call.1} parent=1 // pred_check_branch
      %565 = sbr.rel (0) target = $region77
    $region76: #{tpu_custom_call.1} parent=1 // pred_region
      %566 = dma.done [#allocation4], 256
    $region77: #{tpu_custom_call.1} parent=1 // pred_fallthru
      _
    // Predicated region
    $region78: #{tpu_custom_call.1} parent=1 // pred_check
      _
    $region79: #{tpu_custom_call.1} parent=1 // pred_check_branch
      %568 = sbr.rel (0) target = $region81
    $region80: #{tpu_custom_call.1} parent=1 // pred_region
      _
    $region81: #{tpu_custom_call.1} parent=1 // pred_fallthru
      _
    // Predicated region
    $region82: #{tpu_custom_call.1} parent=1 // pred_check
      _
    $region83: #{tpu_custom_call.1} parent=1 // pred_check_branch
      %570 = sbr.rel (0) target = $region85
    $region84: #{tpu_custom_call.1} parent=1 // pred_region
      _
    $region85: #{tpu_custom_call.1} parent=1 // pred_fallthru
      _
    // Predicated region
    $region86: #{tpu_custom_call.1} parent=1 // pred_check
      _
    $region87: #{tpu_custom_call.1} parent=1 // pred_check_branch
      %572 = sbr.rel (0) target = $region89
    $region88: #{tpu_custom_call.1} parent=1 // pred_region
      _
    $region89: #{tpu_custom_call.1} parent=1 // pred_fallthru
      _
    %573 = vsyncpa [#allocation3], 1
    %574 = vsyncpa [#allocation6], 1
    %575 = vsyncpa [#allocation9], 1
    %576 = vsyncpa [#allocation4], 1

</llo_original>
